<compile_context>
chip_gen: v7x
topology: tpu7x:2x2x1
jax: 0.10.0
libtpu: 0.0.40
codegen_flags: <defaults>
</compile_context>

<pallas_src>
import functools
import math

import jax
import jax.numpy as jnp
from jax.experimental import pallas as pl
from jax.experimental.pallas import tpu as pltpu


_LANES = 512          # lane-dense last dim (multiple of 128 -> unmasked vst)
_MAX_TILE_ROWS = 1024  # ~2 MiB f32 blocks; 3 arrays x 2 bufs ~= 12 MiB VMEM


def _coefficients(r, index):
    """Fold the scalar algebra of the forward pass into two coefficients."""
    t = r / (r + 1.0) * index
    half_at2 = 0.5 * (r + 1.0) * t * t
    c10 = -(r + 0.5) * t + half_at2
    c23 = 0.5 * t + half_at2
    return c10, c23


def _saxpy_kernel_static(flo10_ref, flo23_ref, out_ref, *, c10, c23):
    # c10/c23 are compile-time Python floats (closure-folded).
    x10 = flo10_ref[...].astype(jnp.float32)
    x23 = flo23_ref[...].astype(jnp.float32)
    out_ref[...] = (c10 * x10 + c23 * x23).astype(out_ref.dtype)


def _saxpy_kernel_smem(coef_ref, flo10_ref, flo23_ref, out_ref):
    # coef_ref: SMEM (2,) f32 -> [c10, c23] (traced-scalar fallback path).
    c10 = coef_ref[0]
    c23 = coef_ref[1]
    x10 = flo10_ref[...].astype(jnp.float32)
    x23 = flo23_ref[...].astype(jnp.float32)
    out_ref[...] = (c10 * x10 + c23 * x23).astype(out_ref.dtype)


def _pick_tile_rows(rows):
    if rows <= 8:
        # Single block; sublane dim == full array dim satisfies the (8,128)
        # constraint even when rows is not a multiple of 8.
        return rows
    # Target ~2 MiB blocks but keep >= 2 grid steps so the "parallel" axis
    # actually splits across v7x's two TensorCores for medium inputs.
    target = min(_MAX_TILE_ROWS, pl.cdiv(rows, 2))
    return max(8, (target // 8) * 8)


def _saxpy_pallas(x10_2d, x23_2d, c10, c23, coefs_arr):
    """out = c10 * x10 + c23 * x23 over a (rows, _LANES) slab, original dtype."""
    rows = x10_2d.shape[0]
    dtype = x10_2d.dtype
    itemsize = jnp.dtype(dtype).itemsize

    tile_rows = _pick_tile_rows(rows)
    grid = (pl.cdiv(rows, tile_rows),)

    block_bytes = tile_rows * _LANES * itemsize
    # 2 inputs + 1 output, double-buffered, plus headroom; fits v5e/v6e/v7x.
    vmem_limit = min(32 << 20, max(16 << 20, 6 * block_bytes + (8 << 20)))

    nelems = rows * _LANES
    cost = pl.CostEstimate(
        flops=3 * nelems,
        transcendentals=0,
        bytes_accessed=3 * nelems * itemsize,
    )

    data_spec = pl.BlockSpec((tile_rows, _LANES), lambda i: (i, 0))
    out_shape = jax.ShapeDtypeStruct((rows, _LANES), dtype)
    compiler_params = pltpu.CompilerParams(
        dimension_semantics=("parallel",),  # megacore-shard on v7x
        vmem_limit_bytes=vmem_limit,
    )
    # TODO(synk): if xprof shows exposed DMA on v7x, add
    # pipeline_mode=pl.Buffered(3) to the two input BlockSpecs.

    if c10 is not None:  # static scalars: fold coefficients into the kernel
        kernel = functools.partial(_saxpy_kernel_static, c10=c10, c23=c23)
        return pl.pallas_call(
            kernel,
            out_shape=out_shape,
            grid=grid,
            in_specs=[data_spec, data_spec],
            out_specs=data_spec,
            compiler_params=compiler_params,
            cost_estimate=cost,
        )(x10_2d, x23_2d)

    # Traced scalars: pass a tiny (2,) coefficient table through SMEM.
    return pl.pallas_call(
        _saxpy_kernel_smem,
        out_shape=out_shape,
        grid=grid,
        in_specs=[
            pl.BlockSpec(memory_space=pltpu.MemorySpace.SMEM),
            data_spec,
            data_spec,
        ],
        out_specs=data_spec,
        compiler_params=compiler_params,
        cost_estimate=cost,
    )(coefs_arr, x10_2d, x23_2d)


def ac_fusion_layer(flo10, flo12, flo23, r, index):
    """Pallas implementation of AcFusionLayer.forward.

    flo10, flo12, flo23: flow tensors of identical shape (e.g. (N, 2, H, W)).
    flo12 is unused, matching the PyTorch reference.
    r, index: Python scalars (preferred; coefficients fold into the kernel)
    or traced 0-d arrays (SMEM fallback). Note r == -1 divides by zero, same
    as the PyTorch reference.
    """
    del flo12  # unused by the reference forward pass

    orig_shape = flo10.shape
    dtype = flo10.dtype
    total = math.prod(orig_shape)

    static_scalars = isinstance(r, (int, float)) and isinstance(index, (int, float))
    if static_scalars:
        c10, c23 = _coefficients(float(r), float(index))
        coefs_arr = None
    else:
        c10 = c23 = None
        cc10, cc23 = _coefficients(
            jnp.asarray(r, jnp.float32), jnp.asarray(index, jnp.float32)
        )
        coefs_arr = jnp.stack([cc10, cc23]).astype(jnp.float32)

    x10 = flo10.reshape(-1)
    x23 = flo23.reshape(-1)

    main = (total // _LANES) * _LANES

    if main == total:
        # Fast path: contiguous reshape only, no pad, no output slice.
        out2d = _saxpy_pallas(
            x10.reshape(-1, _LANES), x23.reshape(-1, _LANES), c10, c23, coefs_arr
        )
        return out2d.reshape(orig_shape)

    # Misaligned path: kernel on the aligned prefix, plain jnp on the tail.
    pieces = []
    if main:
        out_main = _saxpy_pallas(
            x10[:main].reshape(-1, _LANES),
            x23[:main].reshape(-1, _LANES),
            c10, c23, coefs_arr,
        )
        pieces.append(out_main.reshape(-1))
    if static_scalars:
        tc10 = jnp.float32(c10)
        tc23 = jnp.float32(c23)
    else:
        tc10, tc23 = coefs_arr[0], coefs_arr[1]
    tail = (
        tc10 * x10[main:].astype(jnp.float32)
        + tc23 * x23[main:].astype(jnp.float32)
    ).astype(dtype)
    pieces.append(tail)
    out = jnp.concatenate(pieces) if len(pieces) > 1 else pieces[0]
    return out.reshape(orig_shape)


def _reference(flo10, flo12, flo23, r, index):
    # Pure-JAX reference mirroring the PyTorch forward exactly.
    del flo12
    t = r / (r + 1.0) * index
    v = r * -flo10 + (flo23 - flo10) / 2.0
    a = (r + 1.0) * (flo23 + flo10)
    return v * t + 0.5 * a * t ** 2


if __name__ == "__main__":
    key = jax.random.PRNGKey(0)
    k10, k12, k23, k10b, k23b = jax.random.split(key, 5)

    # Flow-like shapes: batch=2, 2 flow channels, 16x16 spatial (numel % 512 == 0).
    N, C, H, W = 2, 2, 16, 16
    flo10 = jax.random.normal(k10, (N, C, H, W), dtype=jnp.float32)
    flo12 = jax.random.normal(k12, (N, C, H, W), dtype=jnp.float32)
    flo23 = jax.random.normal(k23, (N, C, H, W), dtype=jnp.float32)

    r = 2.0      # frame-rate ratio (static Python scalar -> folded constants)
    index = 1.0  # target time index

    out = ac_fusion_layer(flo10, flo12, flo23, r, index)
    out = jax.block_until_ready(out)
    ref = _reference(flo10, flo12, flo23, r, index)
    assert out.shape == ref.shape and out.dtype == ref.dtype
    assert jnp.allclose(out, ref, atol=1e-5, rtol=1e-5)

    # Misaligned-shape path (aligned prefix via kernel + jnp tail) with traced
    # scalars (SMEM coefficient table).
    flo10b = jax.random.normal(k10b, (2, 2, 15, 15), dtype=jnp.float32)
    flo23b = jax.random.normal(k23b, (2, 2, 15, 15), dtype=jnp.float32)
    r_t = jnp.float32(1.5)
    idx_t = jnp.float32(0.5)
    out_b = jax.block_until_ready(
        ac_fusion_layer(flo10b, None, flo23b, r_t, idx_t)
    )
    ref_b = _reference(flo10b, None, flo23b, r_t, idx_t)
    assert jnp.allclose(out_b, ref_b, atol=1e-5, rtol=1e-5)

    print("KERNEL_OK")
</pallas_src>

<mosaic_0001>
module attributes {stable_mosaic.version = 11 : i64} {
  func.func @_saxpy_kernel_static(%arg0: i32, %arg1: memref<2x512xf32, #tpu.memory_space<vmem>>, %arg2: memref<2x512xf32, #tpu.memory_space<vmem>>, %arg3: memref<2x512xf32, #tpu.memory_space<vmem>>) attributes {dimension_semantics = [#tpu.dimension_semantics<parallel>], iteration_bounds = array<i64: 1>, scalar_prefetch = 0 : i64, scratch_operands = 0 : i64, tpu.core_type = #tpu.core_type<tc>, window_params = [{transform_indices = @transform_0, window_bounds = array<i64: 2, 512>}, {transform_indices = @transform_1, window_bounds = array<i64: 2, 512>}, {transform_indices = @transform_2, window_bounds = array<i64: 2, 512>}]} {
    %c0 = arith.constant 0 : index
    %c0_0 = arith.constant 0 : index
    %0 = vector.load %arg1[%c0, %c0_0] : memref<2x512xf32, #tpu.memory_space<vmem>>, vector<2x512xf32>
    %c0_1 = arith.constant 0 : index
    %c0_2 = arith.constant 0 : index
    %1 = vector.load %arg2[%c0_1, %c0_2] : memref<2x512xf32, #tpu.memory_space<vmem>>, vector<2x512xf32>
    %cst = arith.constant -1.000000e+00 : f32
    %2 = vector.broadcast %cst : f32 to vector<2x512xf32>
    %3 = arith.mulf %2, %0 : vector<2x512xf32>
    %cst_3 = arith.constant 1.000000e+00 : f32
    %4 = vector.broadcast %cst_3 : f32 to vector<2x512xf32>
    %5 = arith.mulf %4, %1 : vector<2x512xf32>
    %6 = arith.addf %3, %5 : vector<2x512xf32>
    %c0_4 = arith.constant 0 : index
    %c0_5 = arith.constant 0 : index
    %7 = vector.load %arg3[%c0_4, %c0_5] : memref<2x512xf32, #tpu.memory_space<vmem>>, vector<2x512xf32>
    tpu.vector_store %arg3[%c0_4, %c0_5], %6 {strides = array<i32>} : memref<2x512xf32, #tpu.memory_space<vmem>>, vector<2x512xf32>,
    return
  }
  func.func @transform_0(%arg0: i32) -> (i32, i32) {
    %c0_i32 = arith.constant 0 : i32
    %c0_i32_0 = arith.constant 0 : i32
    return %arg0, %c0_i32 : i32, i32
  }
  func.func @transform_1(%arg0: i32) -> (i32, i32) {
    %c0_i32 = arith.constant 0 : i32
    %c0_i32_0 = arith.constant 0 : i32
    return %arg0, %c0_i32 : i32, i32
  }
  func.func @transform_2(%arg0: i32) -> (i32, i32) {
    %c0_i32 = arith.constant 0 : i32
    %c0_i32_0 = arith.constant 0 : i32
    return %arg0, %c0_i32 : i32, i32
  }
}

</mosaic_0001>

<llo_original>
// kernel: tpu_custom_call.1
$region0: #{tpu_custom_call.1}
  #allocation0 [shape = 'u32[]', space=smem, size = 0x4, offset = 0x4, fixed_abs, tag = 'smem constant byte address 0x4 - core index']
  #allocation1 [shape = 'u32[144,128]{1,0:T(1,128)}', space=vmem, size = 0x12000, scoped, tag = 'internal scratch']
  %s0 = inlined_call_operand.hbm [shape: f32[2,512], index: 0, kind: input, shape index: {}]
  %s1 = inlined_call_operand.hbm [shape: f32[2,512], index: 1, kind: input, shape index: {}]
  %s2 = inlined_call_operand.hbm [shape: f32[2,512], index: 2, kind: output, shape index: {}]
  %s3 = sld [smem:[#allocation0]]
  $region26: #{tpu_custom_call.1} parent=0
    _
  %s5 = ssub.s32 1, %s3
  %s6 = scalar_select 0, %s5, %s3
  $region1: #{tpu_custom_call.1} parent=0
    #allocation2 [shape = 'u8[4096]{0}', space=vmem, size = 0x1000, scoped, tag = 'input window, operand 0, single buffered']
    #allocation3 [shape = 's32[1]{0}', space=sflag, size = 0x4, scoped, tag = 'scoped memory for tpu_custom_call.1']
    #allocation4 [shape = 's32[1]{0}', space=sflag, size = 0x4, scoped, tag = 'scoped memory for tpu_custom_call.1']
    #allocation5 [shape = 'u8[4096]{0}', space=vmem, size = 0x1000, scoped, tag = 'input window, operand 1, single buffered']
    #allocation6 [shape = 's32[1]{0}', space=sflag, size = 0x4, scoped, tag = 'scoped memory for tpu_custom_call.1']
    #allocation7 [shape = 'u8[4096]{0}', space=vmem, size = 0x1000, scoped, tag = 'output window, operand 0, single buffered']
    %7 = vsyncpa [#allocation3], 0
    %8 = vsyncpa [#allocation6], 0
    %9 = vsyncpa [#allocation4], 0
    // Predicated region
    $region2: #{tpu_custom_call.1} parent=1 // pred_check
      _
    $region3: #{tpu_custom_call.1} parent=1 // pred_check_branch
      %11 = sbr.rel (0) target = $region5
    $region4: #{tpu_custom_call.1} parent=1 // pred_region
      %s13 = ssub.s32 128, 128
      %14 = vsyncadd [#allocation3], %s13
      %s16 = sshll.u32 [#allocation2], 4
      %s17 = int_to_ptr.vmem [resolvable:$true] %s16
      %19 = dma.hbm_to_vmem [thread:$0]  %s0, 128, %s17, [#allocation3]
    $region5: #{tpu_custom_call.1} parent=1 // pred_fallthru
      _
    // Predicated region
    $region6: #{tpu_custom_call.1} parent=1 // pred_check
      _
    $region7: #{tpu_custom_call.1} parent=1 // pred_check_branch
      %21 = sbr.rel (0) target = $region9
    $region8: #{tpu_custom_call.1} parent=1 // pred_region
      %s23 = ssub.s32 128, 128
      %24 = vsyncadd [#allocation6], %s23
      %s26 = sshll.u32 [#allocation5], 4
      %s27 = int_to_ptr.vmem [resolvable:$true] %s26
      %29 = dma.hbm_to_vmem [thread:$0]  %s1, 128, %s27, [#allocation6]
    $region9: #{tpu_custom_call.1} parent=1 // pred_fallthru
      _
    // Predicated region
    $region10: #{tpu_custom_call.1} parent=1 // pred_check
      _
    $region11: #{tpu_custom_call.1} parent=1 // pred_check_branch
      %31 = sbr.rel (0) target = $region13
    $region12: #{tpu_custom_call.1} parent=1 // pred_region
      %32 = dma.done [#allocation3], 128
    $region13: #{tpu_custom_call.1} parent=1 // pred_fallthru
      _
    // Predicated region
    $region14: #{tpu_custom_call.1} parent=1 // pred_check
      _
    $region15: #{tpu_custom_call.1} parent=1 // pred_check_branch
      %34 = sbr.rel (0) target = $region17
    $region16: #{tpu_custom_call.1} parent=1 // pred_region
      %35 = dma.done [#allocation6], 128
    $region17: #{tpu_custom_call.1} parent=1 // pred_fallthru
      _
    %v36 = vld [vmem:[#allocation2] sm:$0xff]
    %v37 = vld [vmem:[#allocation5] sm:$0xff]
    %v38 = vmul.f32 %v36, -1.0
    %v39 = vadd.f32 %v38, %v37
    %40 = vst [vmem:[#allocation7] sm:$0xff] %v39
    // Predicated region
    $region18: #{tpu_custom_call.1} parent=1 // pred_check
      _
    $region19: #{tpu_custom_call.1} parent=1 // pred_check_branch
      %42 = sbr.rel (0) target = $region21
    $region20: #{tpu_custom_call.1} parent=1 // pred_region
      %s44 = ssub.s32 128, 128
      %45 = vsyncadd [#allocation4], %s44
      %s47 = sshll.u32 [#allocation7], 4
      %s48 = int_to_ptr.vmem [resolvable:$true] %s47
      %50 = dma.vmem_to_hbm [thread:$0]  %s48, 128, %s2, [#allocation4]
    $region21: #{tpu_custom_call.1} parent=1 // pred_fallthru
      _
    // Predicated region
    $region22: #{tpu_custom_call.1} parent=1 // pred_check
      _
    $region23: #{tpu_custom_call.1} parent=1 // pred_check_branch
      %52 = sbr.rel (0) target = $region25
    $region24: #{tpu_custom_call.1} parent=1 // pred_region
      %53 = dma.done [#allocation4], 128
    $region25: #{tpu_custom_call.1} parent=1 // pred_fallthru
      _
    %54 = vsyncpa [#allocation3], 1
    %55 = vsyncpa [#allocation6], 1
    %56 = vsyncpa [#allocation4], 1

</llo_original>
